<compile_context>
chip_gen: v5e
topology: v5e:2x2
jax: 0.10.0
libtpu: 0.0.40
codegen_flags: <defaults>
</compile_context>

<pallas_src>
import functools
import math

import jax
import jax.numpy as jnp
from jax import lax
from jax.experimental import pallas as pl
from jax.experimental.pallas import tpu as pltpu


def _round_up(x, m):
    return (x + m - 1) // m * m


def _vmem_capacity_bytes():
    """Generation-aware VMEM size; conservative fallback = 64 MiB (v7x/TC)."""
    try:
        info = pltpu.get_tpu_info()
        for attr in ("vmem_capacity_bytes", "vmem_bytes", "vmem_size_bytes"):
            v = getattr(info, attr, None)
            if v:
                return int(v)
    except Exception:
        pass
    return 64 * 1024 * 1024


def hypernet_kernel(prev_ref, w1t_ref, b1_ref, coef_ref, w2_ref, out_ref,
                    u_ref, *, scale1, Mp, C1, tk, Kp):
    """Grid = (batch blocks i, K blocks k).  K is the reduction axis."""
    k = pl.program_id(1)

    @pl.when(k == 0)
    def _build_u_and_init():
        # FC1 (EqualLinear, activation=None) at augmented width Mp:
        # w1t is zero-padded, the bias row already carries [b1*lr_mul, 1, 0...],
        # so h1aug = [h1, 1, 0...] comes straight out of one small MXU dot.
        h1aug = jnp.dot(prev_ref[...] * scale1, w1t_ref[...],
                        preferred_element_type=jnp.float32) + b1_ref[...]
        # U[b, j*Mp + m] = coef[b, j] * h1aug[b, m]  (outer product, bf16).
        if C1 <= 64:
            coef = coef_ref[...]                       # (bb, C1) f32
            for j in range(C1):
                u_ref[:, j * Mp:(j + 1) * Mp] = (
                    coef[:, j:j + 1] * h1aug).astype(u_ref.dtype)
        else:
            # Bounded code size for large in_dim_current.
            def body(j, carry):
                base = pl.multiple_of(j * Mp, 8)
                cj = coef_ref[:, pl.ds(j, 1)]
                u_ref[:, pl.ds(base, Mp)] = (cj * h1aug).astype(u_ref.dtype)
                return carry
            lax.fori_loop(0, C1, body, 0, unroll=4)
        if Kp > C1 * Mp:                                # zero the K tail padding
            u_ref[:, C1 * Mp:Kp] = jnp.zeros(
                (u_ref.shape[0], Kp - C1 * Mp), u_ref.dtype)
        out_ref[...] = jnp.zeros_like(out_ref)          # f32 accumulator

    # K-tiled FC2 + per-sample combine, all on the MXU, f32 accumulation.
    start = pl.multiple_of(k * tk, 128)
    out_ref[...] += jnp.dot(u_ref[:, pl.ds(start, tk)], w2_ref[...],
                            preferred_element_type=jnp.float32)


def prepare_hypernet_params(w1, b1, w2, b2, *, in_dim_current, out_dim,
                            lr_mul=1.0, compute_dtype=jnp.bfloat16,
                            max_k_rows_per_step=None):
    """One-time parameter prep (call OUTSIDE the per-step forward)."""
    w1 = jnp.asarray(w1, jnp.float32)
    b1 = jnp.asarray(b1, jnp.float32)
    w2 = jnp.asarray(w2, jnp.float32)
    b2 = jnp.asarray(b2, jnp.float32)

    mid, in_prev = w1.shape
    C = in_dim_current
    C1 = C + 1
    D = out_dim
    assert w2.shape == (C1 * D, mid), "w2 shape mismatch"
    Dp = _round_up(D, 128)          # lane-align the output
    Mp = _round_up(mid + 1, 8)      # augmented FC1 width (mid + bias column)

    scale1 = (1.0 / math.sqrt(in_prev)) * lr_mul if in_prev > 0 else lr_mul
    scale2 = (1.0 / math.sqrt(mid)) * lr_mul if mid > 0 else lr_mul

    # FC1 params: w1^T zero-padded to Mp cols; bias row = [b1*lr_mul, 1, 0...]
    w1t = jnp.pad(w1.T, ((0, 0), (0, Mp - mid)))                       # f32
    b1aug = jnp.concatenate(
        [b1 * lr_mul, jnp.ones((1,), jnp.float32),
         jnp.zeros((Mp - mid - 1,), jnp.float32)]).reshape(1, Mp)      # f32

    # Generation-aware VMEM policy.
    cap = _vmem_capacity_bytes()
    vmem_limit = max(32 << 20, min(int(cap) * 3 // 4, 100 << 20))
    itemsize = jnp.dtype(compute_dtype).itemsize

    # K-reduction tiling over W2' rows (128-aligned so U slices are lane-dense).
    K = C1 * Mp
    K128 = _round_up(K, 128)
    per_buf_budget = (vmem_limit // 2) // 2     # W2' double buffer <= half limit
    tk_max = max(128, (per_buf_budget // (Dp * itemsize)) // 128 * 128)
    if max_k_rows_per_step is not None:
        tk_max = max(128, min(tk_max, _round_up(max_k_rows_per_step, 128)))
    tk = min(K128, tk_max)
    n_kb = pl.cdiv(K128, tk)
    tk = _round_up(pl.cdiv(K128, n_kb), 128)    # even blocks, minimal tail
    Kp = tk * n_kb

    # W2' relayout: row (j*Mp + m), col d.  scale2 / lr_mul folded in once.
    w2_jmd = jnp.transpose(w2.reshape(C1, D, mid), (0, 2, 1)) * scale2  # (C1,mid,D)
    b2_j1d = (b2 * lr_mul).reshape(C1, 1, D)
    zrows = jnp.zeros((C1, Mp - mid - 1, D), jnp.float32)
    w2p = jnp.concatenate([w2_jmd, b2_j1d, zrows], axis=1).reshape(C1 * Mp, D)
    w2p = jnp.pad(w2p, ((0, Kp - C1 * Mp), (0, Dp - D))).astype(compute_dtype)

    return dict(w1t=w1t, b1aug=b1aug, w2p=w2p, scale1=scale1,
                in_prev=in_prev, mid=mid, Mp=Mp, C1=C1, D=D, Dp=Dp,
                Kp=Kp, tk=tk, n_kb=n_kb, compute_dtype=compute_dtype,
                vmem_limit=vmem_limit, batch_budget=vmem_limit // 4)


def two_layer_hypernetwork(prev_correlated_w, current_w, prepped):
    p = prepped
    B, C = current_w.shape
    assert C + 1 == p['C1']
    in_prev, Mp, C1, Dp = p['in_prev'], p['Mp'], p['C1'], p['Dp']
    Kp, tk, n_kb = p['Kp'], p['tk'], p['n_kb']
    itemsize = jnp.dtype(p['compute_dtype']).itemsize

    # Batch-block policy: whole (8-padded) batch in one block when it fits the
    # per-batch-row VMEM budget (U scratch + prev/coef/out double buffers), so
    # W2' is streamed exactly once.  Otherwise pad B to a multiple of bb.
    B8 = _round_up(max(B, 8), 8)
    per_row = Kp * itemsize + 2 * 4 * (in_prev + C1 + Dp) + 4 * Dp
    bb_cap = max(8, (p['batch_budget'] // max(per_row, 1)) // 8 * 8)
    bb = min(B8, bb_cap)
    B_pad = _round_up(B8, bb)
    n_bb = B_pad // bb

    prev = jnp.pad(jnp.asarray(prev_correlated_w, jnp.float32),
                   ((0, B_pad - B), (0, 0)))
    # coef[b] = [current_w[b], 1.0]; padded batch rows are all-zero -> out rows 0.
    coef = jnp.concatenate([jnp.asarray(current_w, jnp.float32),
                            jnp.ones((B, 1), jnp.float32)], axis=1)
    coef = jnp.pad(coef, ((0, B_pad - B), (0, 0)))

    kernel = functools.partial(hypernet_kernel, scale1=p['scale1'],
                               Mp=Mp, C1=C1, tk=tk, Kp=Kp)

    out = pl.pallas_call(
        kernel,
        out_shape=jax.ShapeDtypeStruct((B_pad, Dp), jnp.float32),
        grid_spec=pltpu.PrefetchScalarGridSpec(
            num_scalar_prefetch=0,
            grid=(n_bb, n_kb),
            in_specs=[
                pl.BlockSpec((bb, in_prev), lambda i, k: (i, 0)),   # prev  (f32)
                pl.BlockSpec((in_prev, Mp), lambda i, k: (0, 0)),   # w1t   (f32)
                pl.BlockSpec((1, Mp), lambda i, k: (0, 0)),         # b1aug (f32)
                pl.BlockSpec((bb, C1), lambda i, k: (i, 0)),        # coef  (f32)
                pl.BlockSpec((tk, Dp), lambda i, k: (k, 0)),        # W2' K-tile
            ],
            out_specs=pl.BlockSpec((bb, Dp), lambda i, k: (i, 0)),
            scratch_shapes=[pltpu.VMEM((bb, Kp), p['compute_dtype'])],  # U
        ),
        compiler_params=pltpu.CompilerParams(
            dimension_semantics=("parallel", "arbitrary"),
            vmem_limit_bytes=int(p['vmem_limit'])),
    )(prev, p['w1t'], p['b1aug'], coef, p['w2p'])

    return out[:B, :p['D']]


def reference_jax(prev_w, current_w, params, *, in_dim_current, out_dim, lr_mul=1.0):
    w1, b1, w2, b2 = params
    scale1 = 1.0 / math.sqrt(w1.shape[1]) * lr_mul
    scale2 = 1.0 / math.sqrt(w2.shape[1]) * lr_mul
    h1 = prev_w @ (w1 * scale1).T + b1 * lr_mul
    h2 = h1 @ (w2 * scale2).T + b2 * lr_mul
    B = current_w.shape[0]
    h2 = h2.reshape(B, in_dim_current + 1, out_dim)
    return (jnp.einsum('bc,bcd->bd', current_w, h2[:, :in_dim_current, :])
            + h2[:, in_dim_current, :])


if __name__ == "__main__":
    # Small shapes implied by the module's constructor / forward.
    B = 4
    in_dim_prev = 32
    in_dim_current = 16
    middle_dim = 64
    out_dim = 128
    lr_mul = 1.0
    bias_init = 0.1

    key = jax.random.PRNGKey(0)
    k_prev, k_cur, k_w1, k_w2 = jax.random.split(key, 4)

    prev_correlated_w = jax.random.normal(k_prev, (B, in_dim_prev), jnp.float32)
    current_w = jax.random.normal(k_cur, (B, in_dim_current), jnp.float32)

    # EqualLinear init: weight = randn(out, in) / lr_mul, bias = bias_init.
    w1 = jax.random.normal(k_w1, (middle_dim, in_dim_prev), jnp.float32) / lr_mul
    b1 = jnp.full((middle_dim,), bias_init, jnp.float32)
    w2 = jax.random.normal(k_w2, (out_dim * (in_dim_current + 1), middle_dim),
                           jnp.float32) / lr_mul
    b2 = jnp.full((out_dim * (in_dim_current + 1),), bias_init, jnp.float32)
    params = (w1, b1, w2, b2)

    ref = reference_jax(prev_correlated_w, current_w, params,
                        in_dim_current=in_dim_current, out_dim=out_dim,
                        lr_mul=lr_mul)

    # (a) f32 weights, single K block: validates the restructured math.
    prepped_f32 = prepare_hypernet_params(
        w1, b1, w2, b2, in_dim_current=in_dim_current, out_dim=out_dim,
        lr_mul=lr_mul, compute_dtype=jnp.float32)
    out_f32 = jax.block_until_ready(
        two_layer_hypernetwork(prev_correlated_w, current_w, prepped_f32))

    # (b) bf16 weights (production path), auto K tile.
    prepped_bf16 = prepare_hypernet_params(
        w1, b1, w2, b2, in_dim_current=in_dim_current, out_dim=out_dim,
        lr_mul=lr_mul)
    out_bf16 = jax.block_until_ready(
        two_layer_hypernetwork(prev_correlated_w, current_w, prepped_bf16))

    # (c) bf16 weights, forced small K tile to exercise the pipelined
    #     multi-step K-reduction path.
    prepped_tiled = prepare_hypernet_params(
        w1, b1, w2, b2, in_dim_current=in_dim_current, out_dim=out_dim,
        lr_mul=lr_mul, max_k_rows_per_step=256)
    out_tiled = jax.block_until_ready(
        two_layer_hypernetwork(prev_correlated_w, current_w, prepped_tiled))

    assert out_f32.shape == (B, out_dim)
    assert out_bf16.shape == (B, out_dim)
    assert out_tiled.shape == (B, out_dim)
    assert jnp.allclose(out_f32, ref, atol=1e-1, rtol=1e-2), "f32 path mismatch"
    assert jnp.allclose(out_bf16, ref, atol=1.5e-1, rtol=2e-2), "bf16 path mismatch"
    assert jnp.allclose(out_tiled, ref, atol=1.5e-1, rtol=2e-2), "bf16 tiled mismatch"
    print("KERNEL_OK")
</pallas_src>

<mosaic_0001>
module attributes {stable_mosaic.version = 11 : i64} {
  func.func @hypernet_kernel(%arg0: i32, %arg1: i32, %arg2: memref<8x32xf32, #tpu.memory_space<vmem>>, %arg3: memref<32x72xf32, #tpu.memory_space<vmem>>, %arg4: memref<1x72xf32, #tpu.memory_space<vmem>>, %arg5: memref<8x17xf32, #tpu.memory_space<vmem>>, %arg6: memref<1280x128xf32, #tpu.memory_space<vmem>>, %arg7: memref<8x128xf32, #tpu.memory_space<vmem>>, %arg8: memref<8x1280xf32, #tpu.memory_space<vmem>>) attributes {dimension_semantics = [#tpu.dimension_semantics<parallel>, #tpu.dimension_semantics<arbitrary>], iteration_bounds = array<i64: 1, 1>, scalar_prefetch = 0 : i64, scratch_operands = 1 : i64, tpu.core_type = #tpu.core_type<tc>, window_params = [{transform_indices = @transform_0, window_bounds = array<i64: 8, 32>}, {pipeline_mode = #tpu.pipeline_mode<synchronous>, transform_indices = @transform_1, window_bounds = array<i64: 32, 72>}, {pipeline_mode = #tpu.pipeline_mode<synchronous>, transform_indices = @transform_2, window_bounds = array<i64: 1, 72>}, {transform_indices = @transform_3, window_bounds = array<i64: 8, 17>}, {transform_indices = @transform_4, window_bounds = array<i64: 1280, 128>}, {transform_indices = @transform_5, window_bounds = array<i64: 8, 128>}]} {
    %c0_i32 = arith.constant 0 : i32
    %0 = arith.cmpi eq, %arg1, %c0_i32 : i32
    %1 = arith.extui %0 : i1 to i32
    %c0_i32_0 = arith.constant 0 : i32
    %2 = arith.cmpi ne, %1, %c0_i32_0 : i32
    scf.if %2 {
      %c0_7 = arith.constant 0 : index
      %c0_8 = arith.constant 0 : index
      %12 = vector.load %arg2[%c0_7, %c0_8] : memref<8x32xf32, #tpu.memory_space<vmem>>, vector<8x32xf32>
      %cst_9 = arith.constant 0.176776692 : f32
      %13 = vector.broadcast %cst_9 : f32 to vector<8x32xf32>
      %14 = arith.mulf %12, %13 : vector<8x32xf32>
      %c0_10 = arith.constant 0 : index
      %c0_11 = arith.constant 0 : index
      %15 = vector.load %arg3[%c0_10, %c0_11] : memref<32x72xf32, #tpu.memory_space<vmem>>, vector<32x72xf32>
      %cst_12 = arith.constant dense<0.000000e+00> : vector<8x72xf32>
      %16 = tpu.matmul %14, %15, %cst_12 {dimension_numbers = #tpu.dot_dimension_numbers<[1], [0], [0], [1], [0, 0, 1, 1], [], []>} : vector<8x32xf32>, vector<32x72xf32>, vector<8x72xf32> -> vector<8x72xf32>
      %c0_13 = arith.constant 0 : index
      %c0_14 = arith.constant 0 : index
      %17 = vector.load %arg4[%c0_13, %c0_14] : memref<1x72xf32, #tpu.memory_space<vmem>>, vector<1x72xf32>
      %18 = vector.broadcast %17 : vector<1x72xf32> to vector<8x72xf32>
      %19 = arith.addf %16, %18 : vector<8x72xf32>
      %c0_15 = arith.constant 0 : index
      %c0_16 = arith.constant 0 : index
      %20 = vector.load %arg5[%c0_15, %c0_16] : memref<8x17xf32, #tpu.memory_space<vmem>>, vector<8x17xf32>
      %21 = vector.extract_strided_slice %20 {offsets = [0, 0], sizes = [8, 1], strides = [1, 1]} : vector<8x17xf32> to vector<8x1xf32>
      %22 = vector.broadcast %21 : vector<8x1xf32> to vector<8x72xf32>
      %23 = arith.mulf %22, %19 : vector<8x72xf32>
      %c0_17 = arith.constant 0 : index
      %c0_18 = arith.constant 0 : index
      %24 = vector.load %arg8[%c0_17, %c0_18] : memref<8x1280xf32, #tpu.memory_space<vmem>>, vector<8x72xf32>
      tpu.vector_store %arg8[%c0_17, %c0_18], %23 {strides = array<i32>} : memref<8x1280xf32, #tpu.memory_space<vmem>>, vector<8x72xf32>,
      %25 = vector.extract_strided_slice %20 {offsets = [0, 1], sizes = [8, 1], strides = [1, 1]} : vector<8x17xf32> to vector<8x1xf32>
      %26 = vector.broadcast %25 : vector<8x1xf32> to vector<8x72xf32>
      %27 = arith.mulf %26, %19 : vector<8x72xf32>
      %c0_19 = arith.constant 0 : index
      %c72 = arith.constant 72 : index
      %28 = vector.load %arg8[%c0_19, %c72] : memref<8x1280xf32, #tpu.memory_space<vmem>>, vector<8x72xf32>
      tpu.vector_store %arg8[%c0_19, %c72], %27 {strides = array<i32>} : memref<8x1280xf32, #tpu.memory_space<vmem>>, vector<8x72xf32>,
      %29 = vector.extract_strided_slice %20 {offsets = [0, 2], sizes = [8, 1], strides = [1, 1]} : vector<8x17xf32> to vector<8x1xf32>
      %30 = vector.broadcast %29 : vector<8x1xf32> to vector<8x72xf32>
      %31 = arith.mulf %30, %19 : vector<8x72xf32>
      %c0_20 = arith.constant 0 : index
      %c144 = arith.constant 144 : index
      %32 = vector.load %arg8[%c0_20, %c144] : memref<8x1280xf32, #tpu.memory_space<vmem>>, vector<8x72xf32>
      tpu.vector_store %arg8[%c0_20, %c144], %31 {strides = array<i32>} : memref<8x1280xf32, #tpu.memory_space<vmem>>, vector<8x72xf32>,
      %33 = vector.extract_strided_slice %20 {offsets = [0, 3], sizes = [8, 1], strides = [1, 1]} : vector<8x17xf32> to vector<8x1xf32>
      %34 = vector.broadcast %33 : vector<8x1xf32> to vector<8x72xf32>
      %35 = arith.mulf %34, %19 : vector<8x72xf32>
      %c0_21 = arith.constant 0 : index
      %c216 = arith.constant 216 : index
      %36 = vector.load %arg8[%c0_21, %c216] : memref<8x1280xf32, #tpu.memory_space<vmem>>, vector<8x72xf32>
      tpu.vector_store %arg8[%c0_21, %c216], %35 {strides = array<i32>} : memref<8x1280xf32, #tpu.memory_space<vmem>>, vector<8x72xf32>,
      %37 = vector.extract_strided_slice %20 {offsets = [0, 4], sizes = [8, 1], strides = [1, 1]} : vector<8x17xf32> to vector<8x1xf32>
      %38 = vector.broadcast %37 : vector<8x1xf32> to vector<8x72xf32>
      %39 = arith.mulf %38, %19 : vector<8x72xf32>
      %c0_22 = arith.constant 0 : index
      %c288 = arith.constant 288 : index
      %40 = vector.load %arg8[%c0_22, %c288] : memref<8x1280xf32, #tpu.memory_space<vmem>>, vector<8x72xf32>
      tpu.vector_store %arg8[%c0_22, %c288], %39 {strides = array<i32>} : memref<8x1280xf32, #tpu.memory_space<vmem>>, vector<8x72xf32>,
      %41 = vector.extract_strided_slice %20 {offsets = [0, 5], sizes = [8, 1], strides = [1, 1]} : vector<8x17xf32> to vector<8x1xf32>
      %42 = vector.broadcast %41 : vector<8x1xf32> to vector<8x72xf32>
      %43 = arith.mulf %42, %19 : vector<8x72xf32>
      %c0_23 = arith.constant 0 : index
      %c360 = arith.constant 360 : index
      %44 = vector.load %arg8[%c0_23, %c360] : memref<8x1280xf32, #tpu.memory_space<vmem>>, vector<8x72xf32>
      tpu.vector_store %arg8[%c0_23, %c360], %43 {strides = array<i32>} : memref<8x1280xf32, #tpu.memory_space<vmem>>, vector<8x72xf32>,
      %45 = vector.extract_strided_slice %20 {offsets = [0, 6], sizes = [8, 1], strides = [1, 1]} : vector<8x17xf32> to vector<8x1xf32>
      %46 = vector.broadcast %45 : vector<8x1xf32> to vector<8x72xf32>
      %47 = arith.mulf %46, %19 : vector<8x72xf32>
      %c0_24 = arith.constant 0 : index
      %c432 = arith.constant 432 : index
      %48 = vector.load %arg8[%c0_24, %c432] : memref<8x1280xf32, #tpu.memory_space<vmem>>, vector<8x72xf32>
      tpu.vector_store %arg8[%c0_24, %c432], %47 {strides = array<i32>} : memref<8x1280xf32, #tpu.memory_space<vmem>>, vector<8x72xf32>,
      %49 = vector.extract_strided_slice %20 {offsets = [0, 7], sizes = [8, 1], strides = [1, 1]} : vector<8x17xf32> to vector<8x1xf32>
      %50 = vector.broadcast %49 : vector<8x1xf32> to vector<8x72xf32>
      %51 = arith.mulf %50, %19 : vector<8x72xf32>
      %c0_25 = arith.constant 0 : index
      %c504 = arith.constant 504 : index
      %52 = vector.load %arg8[%c0_25, %c504] : memref<8x1280xf32, #tpu.memory_space<vmem>>, vector<8x72xf32>
      tpu.vector_store %arg8[%c0_25, %c504], %51 {strides = array<i32>} : memref<8x1280xf32, #tpu.memory_space<vmem>>, vector<8x72xf32>,
      %53 = vector.extract_strided_slice %20 {offsets = [0, 8], sizes = [8, 1], strides = [1, 1]} : vector<8x17xf32> to vector<8x1xf32>
      %54 = vector.broadcast %53 : vector<8x1xf32> to vector<8x72xf32>
      %55 = arith.mulf %54, %19 : vector<8x72xf32>
      %c0_26 = arith.constant 0 : index
      %c576 = arith.constant 576 : index
      %56 = vector.load %arg8[%c0_26, %c576] : memref<8x1280xf32, #tpu.memory_space<vmem>>, vector<8x72xf32>
      tpu.vector_store %arg8[%c0_26, %c576], %55 {strides = array<i32>} : memref<8x1280xf32, #tpu.memory_space<vmem>>, vector<8x72xf32>,
      %57 = vector.extract_strided_slice %20 {offsets = [0, 9], sizes = [8, 1], strides = [1, 1]} : vector<8x17xf32> to vector<8x1xf32>
      %58 = vector.broadcast %57 : vector<8x1xf32> to vector<8x72xf32>
      %59 = arith.mulf %58, %19 : vector<8x72xf32>
      %c0_27 = arith.constant 0 : index
      %c648 = arith.constant 648 : index
      %60 = vector.load %arg8[%c0_27, %c648] : memref<8x1280xf32, #tpu.memory_space<vmem>>, vector<8x72xf32>
      tpu.vector_store %arg8[%c0_27, %c648], %59 {strides = array<i32>} : memref<8x1280xf32, #tpu.memory_space<vmem>>, vector<8x72xf32>,
      %61 = vector.extract_strided_slice %20 {offsets = [0, 10], sizes = [8, 1], strides = [1, 1]} : vector<8x17xf32> to vector<8x1xf32>
      %62 = vector.broadcast %61 : vector<8x1xf32> to vector<8x72xf32>
      %63 = arith.mulf %62, %19 : vector<8x72xf32>
      %c0_28 = arith.constant 0 : index
      %c720 = arith.constant 720 : index
      %64 = vector.load %arg8[%c0_28, %c720] : memref<8x1280xf32, #tpu.memory_space<vmem>>, vector<8x72xf32>
      tpu.vector_store %arg8[%c0_28, %c720], %63 {strides = array<i32>} : memref<8x1280xf32, #tpu.memory_space<vmem>>, vector<8x72xf32>,
      %65 = vector.extract_strided_slice %20 {offsets = [0, 11], sizes = [8, 1], strides = [1, 1]} : vector<8x17xf32> to vector<8x1xf32>
      %66 = vector.broadcast %65 : vector<8x1xf32> to vector<8x72xf32>
      %67 = arith.mulf %66, %19 : vector<8x72xf32>
      %c0_29 = arith.constant 0 : index
      %c792 = arith.constant 792 : index
      %68 = vector.load %arg8[%c0_29, %c792] : memref<8x1280xf32, #tpu.memory_space<vmem>>, vector<8x72xf32>
      tpu.vector_store %arg8[%c0_29, %c792], %67 {strides = array<i32>} : memref<8x1280xf32, #tpu.memory_space<vmem>>, vector<8x72xf32>,
      %69 = vector.extract_strided_slice %20 {offsets = [0, 12], sizes = [8, 1], strides = [1, 1]} : vector<8x17xf32> to vector<8x1xf32>
      %70 = vector.broadcast %69 : vector<8x1xf32> to vector<8x72xf32>
      %71 = arith.mulf %70, %19 : vector<8x72xf32>
      %c0_30 = arith.constant 0 : index
      %c864 = arith.constant 864 : index
      %72 = vector.load %arg8[%c0_30, %c864] : memref<8x1280xf32, #tpu.memory_space<vmem>>, vector<8x72xf32>
      tpu.vector_store %arg8[%c0_30, %c864], %71 {strides = array<i32>} : memref<8x1280xf32, #tpu.memory_space<vmem>>, vector<8x72xf32>,
      %73 = vector.extract_strided_slice %20 {offsets = [0, 13], sizes = [8, 1], strides = [1, 1]} : vector<8x17xf32> to vector<8x1xf32>
      %74 = vector.broadcast %73 : vector<8x1xf32> to vector<8x72xf32>
      %75 = arith.mulf %74, %19 : vector<8x72xf32>
      %c0_31 = arith.constant 0 : index
      %c936 = arith.constant 936 : index
      %76 = vector.load %arg8[%c0_31, %c936] : memref<8x1280xf32, #tpu.memory_space<vmem>>, vector<8x72xf32>
      tpu.vector_store %arg8[%c0_31, %c936], %75 {strides = array<i32>} : memref<8x1280xf32, #tpu.memory_space<vmem>>, vector<8x72xf32>,
      %77 = vector.extract_strided_slice %20 {offsets = [0, 14], sizes = [8, 1], strides = [1, 1]} : vector<8x17xf32> to vector<8x1xf32>
      %78 = vector.broadcast %77 : vector<8x1xf32> to vector<8x72xf32>
      %79 = arith.mulf %78, %19 : vector<8x72xf32>
      %c0_32 = arith.constant 0 : index
      %c1008 = arith.constant 1008 : index
      %80 = vector.load %arg8[%c0_32, %c1008] : memref<8x1280xf32, #tpu.memory_space<vmem>>, vector<8x72xf32>
      tpu.vector_store %arg8[%c0_32, %c1008], %79 {strides = array<i32>} : memref<8x1280xf32, #tpu.memory_space<vmem>>, vector<8x72xf32>,
      %81 = vector.extract_strided_slice %20 {offsets = [0, 15], sizes = [8, 1], strides = [1, 1]} : vector<8x17xf32> to vector<8x1xf32>
      %82 = vector.broadcast %81 : vector<8x1xf32> to vector<8x72xf32>
      %83 = arith.mulf %82, %19 : vector<8x72xf32>
      %c0_33 = arith.constant 0 : index
      %c1080 = arith.constant 1080 : index
      %84 = vector.load %arg8[%c0_33, %c1080] : memref<8x1280xf32, #tpu.memory_space<vmem>>, vector<8x72xf32>
      tpu.vector_store %arg8[%c0_33, %c1080], %83 {strides = array<i32>} : memref<8x1280xf32, #tpu.memory_space<vmem>>, vector<8x72xf32>,
      %85 = vector.extract_strided_slice %20 {offsets = [0, 16], sizes = [8, 1], strides = [1, 1]} : vector<8x17xf32> to vector<8x1xf32>
      %86 = vector.broadcast %85 : vector<8x1xf32> to vector<8x72xf32>
      %87 = arith.mulf %86, %19 : vector<8x72xf32>
      %c0_34 = arith.constant 0 : index
      %c1152 = arith.constant 1152 : index
      %88 = vector.load %arg8[%c0_34, %c1152] : memref<8x1280xf32, #tpu.memory_space<vmem>>, vector<8x72xf32>
      tpu.vector_store %arg8[%c0_34, %c1152], %87 {strides = array<i32>} : memref<8x1280xf32, #tpu.memory_space<vmem>>, vector<8x72xf32>,
      %cst_35 = arith.constant 0.000000e+00 : f32
      %89 = vector.broadcast %cst_35 : f32 to vector<8x56xf32>
      %c0_36 = arith.constant 0 : index
      %c1224 = arith.constant 1224 : index
      %90 = vector.load %arg8[%c0_36, %c1224] : memref<8x1280xf32, #tpu.memory_space<vmem>>, vector<8x56xf32>
      tpu.vector_store %arg8[%c0_36, %c1224], %89 {strides = array<i32>} : memref<8x1280xf32, #tpu.memory_space<vmem>>, vector<8x56xf32>,
      %cst_37 = arith.constant 0.000000e+00 : f32
      %91 = vector.broadcast %cst_37 : f32 to vector<8x128xf32>
      %c0_38 = arith.constant 0 : index
      %c0_39 = arith.constant 0 : index
      %92 = vector.load %arg7[%c0_38, %c0_39] : memref<8x128xf32, #tpu.memory_space<vmem>>, vector<8x128xf32>
      tpu.vector_store %arg7[%c0_38, %c0_39], %91 {strides = array<i32>} : memref<8x128xf32, #tpu.memory_space<vmem>>, vector<8x128xf32>,
    } else {
    }
    %c1280_i32 = arith.constant 1280 : i32
    %3 = arith.muli %arg1, %c1280_i32 : i32
    %4 = tpu.assume_multiple %3, 128 : i32
    %c0 = arith.constant 0 : index
    %c0_1 = arith.constant 0 : index
    %5 = vector.load %arg7[%c0, %c0_1] : memref<8x128xf32, #tpu.memory_space<vmem>>, vector<8x128xf32>
    %c0_2 = arith.constant 0 : index
    %6 = arith.index_cast %4 : i32 to index
    %7 = vector.load %arg8[%c0_2, %6] : memref<8x1280xf32, #tpu.memory_space<vmem>>, vector<8x1280xf32>
    %c0_3 = arith.constant 0 : index
    %c0_4 = arith.constant 0 : index
    %8 = vector.load %arg6[%c0_3, %c0_4] : memref<1280x128xf32, #tpu.memory_space<vmem>>, vector<1280x128xf32>
    %cst = arith.constant dense<0.000000e+00> : vector<8x128xf32>
    %9 = tpu.matmul %7, %8, %cst {dimension_numbers = #tpu.dot_dimension_numbers<[1], [0], [0], [1], [0, 0, 1, 1], [], []>} : vector<8x1280xf32>, vector<1280x128xf32>, vector<8x128xf32> -> vector<8x128xf32>
    %10 = arith.addf %5, %9 : vector<8x128xf32>
    %c0_5 = arith.constant 0 : index
    %c0_6 = arith.constant 0 : index
    %11 = vector.load %arg7[%c0_5, %c0_6] : memref<8x128xf32, #tpu.memory_space<vmem>>, vector<8x128xf32>
    tpu.vector_store %arg7[%c0_5, %c0_6], %10 {strides = array<i32>} : memref<8x128xf32, #tpu.memory_space<vmem>>, vector<8x128xf32>,
    return
  }
  func.func @transform_0(%arg0: i32, %arg1: i32) -> (i32, i32) {
    %c0_i32 = arith.constant 0 : i32
    %c0_i32_0 = arith.constant 0 : i32
    return %arg0, %c0_i32 : i32, i32
  }
  func.func @transform_1(%arg0: i32, %arg1: i32) -> (i32, i32) {
    %c0_i32 = arith.constant 0 : i32
    %c0_i32_0 = arith.constant 0 : i32
    %c0_i32_1 = arith.constant 0 : i32
    return %c0_i32, %c0_i32_0 : i32, i32
  }
  func.func @transform_2(%arg0: i32, %arg1: i32) -> (i32, i32) {
    %c0_i32 = arith.constant 0 : i32
    %c0_i32_0 = arith.constant 0 : i32
    %c0_i32_1 = arith.constant 0 : i32
    return %c0_i32, %c0_i32_0 : i32, i32
  }
  func.func @transform_3(%arg0: i32, %arg1: i32) -> (i32, i32) {
    %c0_i32 = arith.constant 0 : i32
    %c0_i32_0 = arith.constant 0 : i32
    return %arg0, %c0_i32 : i32, i32
  }
  func.func @transform_4(%arg0: i32, %arg1: i32) -> (i32, i32) {
    %c0_i32 = arith.constant 0 : i32
    %c0_i32_0 = arith.constant 0 : i32
    return %arg1, %c0_i32 : i32, i32
  }
  func.func @transform_5(%arg0: i32, %arg1: i32) -> (i32, i32) {
    %c0_i32 = arith.constant 0 : i32
    %c0_i32_0 = arith.constant 0 : i32
    return %arg0, %c0_i32 : i32, i32
  }
}

</mosaic_0001>

<llo_original>
// kernel: tpu_custom_call.1
$region0: #{tpu_custom_call.1}
  #allocation0 [shape = 'u32[]', space=smem, size = 0x4, offset = 0x4, fixed_abs, tag = 'smem constant byte address 0x4 - core index']
  #allocation1 [shape = 'u32[72,128]{1,0:T(1,128)}', space=vmem, size = 0x9000, scoped, tag = 'internal scratch']
  #allocation2 [shape = 'f32[8,1280]{1,0:T(8,128)}', space=vmem, size = 0xa000, scoped, tag = 'scratch operand']
  %s0 = inlined_call_operand.hbm [shape: f32[8,32], index: 0, kind: input, shape index: {}]
  %s1 = inlined_call_operand.hbm [shape: f32[32,72], index: 1, kind: input, shape index: {}]
  %s2 = inlined_call_operand.vmem [shape: f32[1,72], index: 2, kind: input, shape index: {}]
  %s3 = inlined_call_operand.hbm [shape: f32[8,17], index: 3, kind: input, shape index: {}]
  %s4 = inlined_call_operand.hbm [shape: f32[1280,128], index: 4, kind: input, shape index: {}]
  %s5 = inlined_call_operand.hbm [shape: f32[8,128], index: 5, kind: output, shape index: {}]
  %s6 = sld [smem:[#allocation0]]
  $region50: #{tpu_custom_call.1} parent=0
    _
  %s8 = ssub.s32 1, %s6
  %s9 = scalar_select 0, %s8, %s6
  $region1: #{tpu_custom_call.1} parent=0
    #allocation3 [shape = 'u8[4096]{0}', space=vmem, size = 0x1000, scoped, tag = 'input window, operand 0, single buffered']
    #allocation4 [shape = 's32[1]{0}', space=sflag, size = 0x4, scoped, tag = 'scoped memory for tpu_custom_call.1']
    #allocation5 [shape = 's32[1]{0}', space=sflag, size = 0x4, scoped, tag = 'scoped memory for tpu_custom_call.1']
    #allocation6 [shape = 'u8[16384]{0}', space=vmem, size = 0x4000, scoped, tag = 'input window, operand 1, single buffered']
    #allocation7 [shape = 's32[1]{0}', space=sflag, size = 0x4, scoped, tag = 'scoped memory for tpu_custom_call.1']
    #allocation8 [shape = 'u8[4096]{0}', space=vmem, size = 0x1000, scoped, tag = 'input window, operand 3, single buffered']
    #allocation9 [shape = 'u8[655360]{0}', space=vmem, size = 0xa0000, scoped, tag = 'input window, operand 4, single buffered']
    #allocation10 [shape = 's32[1]{0}', space=sflag, size = 0x4, scoped, tag = 'scoped memory for tpu_custom_call.1']
    #allocation11 [shape = 'u8[4096]{0}', space=vmem, size = 0x1000, scoped, tag = 'output window, operand 0, single buffered']
    %10 = vsyncpa [#allocation4], 0
    %11 = vsyncpa [#allocation7], 0
    %12 = vsyncpa [#allocation10], 0
    %13 = vsyncpa [#allocation5], 0
    // Predicated region
    $region2: #{tpu_custom_call.1} parent=1 // pred_check
      _
    $region3: #{tpu_custom_call.1} parent=1 // pred_check_branch
      %15 = sbr.rel (0) target = $region5
    $region4: #{tpu_custom_call.1} parent=1 // pred_region
      %17 = vsyncadd [#allocation4], 0
      %s19 = sshll.u32 %s0, 4
      %s20 = int_to_ptr.hbm [resolvable:$true] %s19
      %s21 = sshll.u32 [#allocation3], 4
      %s22 = int_to_ptr.vmem [resolvable:$true] %s21
      %24 = dma.hbm_to_vmem [thread:$0]  %s20, 128, %s22, [#allocation4]
    $region5: #{tpu_custom_call.1} parent=1 // pred_fallthru
      _
    // Predicated region
    $region6: #{tpu_custom_call.1} parent=1 // pred_check
      _
    $region7: #{tpu_custom_call.1} parent=1 // pred_check_branch
      %26 = sbr.rel (0) target = $region9
    $region8: #{tpu_custom_call.1} parent=1 // pred_region
      %28 = vsyncadd [#allocation7], 0
      %s29 = sshll.u32 %s1, 4
      %s30 = int_to_ptr.hbm [resolvable:$true] %s29
      %s31 = sshll.u32 [#allocation6], 4
      %s32 = int_to_ptr.vmem [resolvable:$true] %s31
      %37 = dma.hbm_to_vmem [thread:$0]  %s30, 512, %s32, [#allocation7], 128, 128, 8
    $region9: #{tpu_custom_call.1} parent=1 // pred_fallthru
      _
    // Predicated region
    $region10: #{tpu_custom_call.1} parent=1 // pred_check
      _
    $region11: #{tpu_custom_call.1} parent=1 // pred_check_branch
      %39 = sbr.rel (0) target = $region13
    $region12: #{tpu_custom_call.1} parent=1 // pred_region
      _
    $region13: #{tpu_custom_call.1} parent=1 // pred_fallthru
      _
    // Predicated region
    $region14: #{tpu_custom_call.1} parent=1 // pred_check
      _
    $region15: #{tpu_custom_call.1} parent=1 // pred_check_branch
      %41 = sbr.rel (0) target = $region17
    $region16: #{tpu_custom_call.1} parent=1 // pred_region
      %43 = vsyncadd [#allocation7], 0
      %s45 = sshll.u32 %s3, 4
      %s46 = int_to_ptr.hbm [resolvable:$true] %s45
      %s47 = sshll.u32 [#allocation8], 4
      %s48 = int_to_ptr.vmem [resolvable:$true] %s47
      %50 = dma.hbm_to_vmem [thread:$0]  %s46, 128, %s48, [#allocation7]
    $region17: #{tpu_custom_call.1} parent=1 // pred_fallthru
      _
    // Predicated region
    $region18: #{tpu_custom_call.1} parent=1 // pred_check
      _
    $region19: #{tpu_custom_call.1} parent=1 // pred_check_branch
      %52 = sbr.rel (0) target = $region21
    $region20: #{tpu_custom_call.1} parent=1 // pred_region
      %54 = vsyncadd [#allocation10], 0
      %s55 = sshll.u32 %s4, 4
      %s56 = int_to_ptr.hbm [resolvable:$true] %s55
      %s57 = sshll.u32 [#allocation9], 4
      %s58 = int_to_ptr.vmem [resolvable:$true] %s57
      %63 = dma.hbm_to_vmem [thread:$0]  %s56, 20480, %s58, [#allocation10], 128, 128, 8
    $region21: #{tpu_custom_call.1} parent=1 // pred_fallthru
      _
    // Predicated region
    $region22: #{tpu_custom_call.1} parent=1 // pred_check
      _
    $region23: #{tpu_custom_call.1} parent=1 // pred_check_branch
      %65 = sbr.rel (0) target = $region25
    $region24: #{tpu_custom_call.1} parent=1 // pred_region
      %67 = dma.done [#allocation4], 128
    $region25: #{tpu_custom_call.1} parent=1 // pred_fallthru
      _
    // Predicated region
    $region26: #{tpu_custom_call.1} parent=1 // pred_check
      _
    $region27: #{tpu_custom_call.1} parent=1 // pred_check_branch
      %69 = sbr.rel (0) target = $region29
    $region28: #{tpu_custom_call.1} parent=1 // pred_region
      %71 = dma.done [#allocation7], 512
    $region29: #{tpu_custom_call.1} parent=1 // pred_fallthru
      _
    // Predicated region
    $region30: #{tpu_custom_call.1} parent=1 // pred_check
      _
    $region31: #{tpu_custom_call.1} parent=1 // pred_check_branch
      %73 = sbr.rel (0) target = $region33
    $region32: #{tpu_custom_call.1} parent=1 // pred_region
      %75 = dma.done [#allocation7], 128
    $region33: #{tpu_custom_call.1} parent=1 // pred_fallthru
      _
    // Predicated region
    $region34: #{tpu_custom_call.1} parent=1 // pred_check
      _
    $region35: #{tpu_custom_call.1} parent=1 // pred_check_branch
      %77 = sbr.rel (0) target = $region37
    $region36: #{tpu_custom_call.1} parent=1 // pred_region
      %79 = dma.done [#allocation10], 20480
    $region37: #{tpu_custom_call.1} parent=1 // pred_fallthru
      _
    %p80 = scmp.eq.s32.totalorder 0, 0
    // Predicated region
    $region38: #{tpu_custom_call.1} parent=1 // pred_check
      %p81 = pneg %p80
    $region39: #{tpu_custom_call.1} parent=1 // pred_check_branch
      %83 = sbr.rel (%p81) target = $region41
    $region40: #{tpu_custom_call.1} parent=1 // pred_region
      %v84 = vld [vmem:[#allocation3] sm:$0xff]
      %v85 = vmul.f32 %v84, 0.17677669
      %v86 = vld [vmem:[#allocation6] sm:$0xff]
      %v87 = vld [vmem:[#allocation6 + $0x8] sm:$0xff]
      %v88 = vld [vmem:[#allocation6 + $0x10] sm:$0xff]
      %v89 = vld [vmem:[#allocation6 + $0x18] sm:$0xff]
      %v90 = vld [vmem:[%s2] sm:$0x1]
      %v92 = vperm.slane %v90, 0
      %vm94 = vcmask 261120
      %v96 = vsel %vm94, %v85, 0
      %98 = vmatpush.msra.mxu0 0.0
      %99 = vmatpush.msra.mxu0 0.0
      %100 = vmatpush.msra.mxu0 0.0
      %101 = vmatpush.msra.mxu0 0.0
      %102 = vmatpush.msra.mxu0 0.0
      %103 = vmatpush.msra.mxu0 0.0
      %104 = vmatpush.msra.mxu0 0.0
      %105 = vmatpush.msra.mxu0 0.0
      %106 = vmatpush.msra.mxu0 0.0
      %107 = vmatpush.msra.mxu0 0.0
      %108 = vmatpush.msra.mxu0 0.0
      %109 = vmatpush.msra.mxu0 0.0
      %110 = vmatpush.msra.mxu0 %v89
      %111 = vmatpush.msra.mxu0 %v88
      %112 = vmatpush.msra.mxu0 %v87
      %113 = vmatpush.msra.mxu0 %v86
      %114 = vmatmul.f32.gmra.mxu0 %v96
      %v115 = vpop.f32.mrf.mxu0
      %v116 = vadd.f32 %v92, %v115
      %117 = vdwg.mxu0
      %v118 = vld [vmem:[#allocation8] sm:$0xff]
      %120 = vset.pattern.permute.xlu0 0
      %121 = vperm.xlu0 %120, %v118
      %v122 = vpop.permute.xlu0 %121
      %v124 = vmul.f32 %v122, %v116
      %vm125 = vcmask 588800
      %126 = vst.msk [vmem:[#allocation2] sm:$0xff] %vm125, %v124
      %127 = vset.pattern.permute.xlu0 1
      %128 = vperm.xlu0 %127, %v118
      %v129 = vpop.permute.xlu0 %128
      %v131 = vmul.f32 %v129, %v116
      %133 = vrot.lane.b32.xlu0 %v131, 72
      %v134 = vpop.permute.xlu0 %133
      %vm136 = vcmask 1048128
      %137 = vst.msk [vmem:[#allocation2] sm:$0xff] %vm136, %v134
      %vm138 = vcmask 130048
      %139 = vst.msk [vmem:[#allocation2 + $0x8] sm:$0xff] %vm138, %v134
      %140 = vset.pattern.permute.xlu0 2
      %141 = vperm.xlu0 %140, %v118
      %v142 = vpop.permute.xlu0 %141
      %v144 = vmul.f32 %v142, %v116
      %146 = vrot.lane.b32.xlu0 %v144, 16
      %v147 = vpop.permute.xlu0 %146
      %vm149 = vcmask 720000
      %150 = vst.msk [vmem:[#allocation2 + $0x8] sm:$0xff] %vm149, %v147
      %151 = vset.pattern.permute.xlu0 3
      %152 = vperm.xlu0 %151, %v118
      %v153 = vpop.permute.xlu0 %152
      %v155 = vmul.f32 %v153, %v116
      %157 = vrot.lane.b32.xlu0 %v155, 88
      %v158 = vpop.permute.xlu0 %157
      %vm160 = vcmask 1048256
      %161 = vst.msk [vmem:[#allocation2 + $0x8] sm:$0xff] %vm160, %v158
      %162 = vst.msk [vmem:[#allocation2 + $0x10] sm:$0xff] %vm94, %v158
      %163 = vset.pattern.permute.xlu0 4
      %164 = vperm.xlu0 %163, %v118
      %v165 = vpop.permute.xlu0 %164
      %v167 = vmul.f32 %v165, %v116
      %169 = vrot.lane.b32.xlu0 %v167, 32
      %v170 = vpop.permute.xlu0 %169
      %vm172 = vcmask 851200
      %173 = vst.msk [vmem:[#allocation2 + $0x10] sm:$0xff] %vm172, %v170
      %174 = vset.pattern.permute.xlu0 5
      %175 = vperm.xlu0 %174, %v118
      %v176 = vpop.permute.xlu0 %175
      %v178 = vmul.f32 %v176, %v116
      %180 = vrot.lane.b32.xlu0 %v178, 104
      %v181 = vpop.permute.xlu0 %180
      %vm183 = vcmask 1048384
      %184 = vst.msk [vmem:[#allocation2 + $0x10] sm:$0xff] %vm183, %v181
      %vm185 = vcmask 392192
      %186 = vst.msk [vmem:[#allocation2 + $0x18] sm:$0xff] %vm185, %v181
      %187 = vset.pattern.permute.xlu0 6
      %188 = vperm.xlu0 %187, %v118
      %v189 = vpop.permute.xlu0 %188
      %v191 = vmul.f32 %v189, %v116
      %193 = vrot.lane.b32.xlu0 %v191, 48
      %v194 = vpop.permute.xlu0 %193
      %vm196 = vcmask 982400
      %197 = vst.msk [vmem:[#allocation2 + $0x18] sm:$0xff] %vm196, %v194
      %198 = vset.pattern.permute.xlu0 7
      %199 = vperm.xlu0 %198, %v118
      %v200 = vpop.permute.xlu0 %199
      %v202 = vmul.f32 %v200, %v116
      %204 = vrot.lane.b32.xlu0 %v202, 120
      %v205 = vpop.permute.xlu0 %204
      %vm207 = vcmask 1048512
      %208 = vst.msk [vmem:[#allocation2 + $0x18] sm:$0xff] %vm207, %v205
      %vm209 = vcmask 523264
      %210 = vst.msk [vmem:[#allocation2 + $0x20] sm:$0xff] %vm209, %v205
      %211 = vset.pattern.permute.xlu0 8
      %212 = vperm.xlu0 %211, %v118
      %v213 = vpop.permute.xlu0 %212
      %v215 = vmul.f32 %v213, %v116
      %217 = vrot.lane.b32.xlu0 %v215, 64
      %v218 = vpop.permute.xlu0 %217
      %vm220 = vcmask 1048064
      %221 = vst.msk [vmem:[#allocation2 + $0x20] sm:$0xff] %vm220, %v218
      %vm222 = vcmask 64512
      %223 = vst.msk [vmem:[#allocation2 + $0x28] sm:$0xff] %vm222, %v218
      %224 = vset.pattern.permute.xlu0 9
      %225 = vperm.xlu0 %224, %v118
      %v226 = vpop.permute.xlu0 %225
      %v228 = vmul.f32 %v226, %v116
      %230 = vrot.lane.b32.xlu0 %v228, 8
      %v231 = vpop.permute.xlu0 %230
      %vm233 = vcmask 654400
      %234 = vst.msk [vmem:[#allocation2 + $0x28] sm:$0xff] %vm233, %v231
      %235 = vset.pattern.permute.xlu0 10
      %236 = vperm.xlu0 %235, %v118
      %v237 = vpop.permute.xlu0 %236
      %v239 = vmul.f32 %v237, %v116
      %241 = vrot.lane.b32.xlu0 %v239, 80
      %v242 = vpop.permute.xlu0 %241
      %vm244 = vcmask 1048192
      %245 = vst.msk [vmem:[#allocation2 + $0x28] sm:$0xff] %vm244, %v242
      %vm246 = vcmask 195584
      %247 = vst.msk [vmem:[#allocation2 + $0x30] sm:$0xff] %vm246, %v242
      %248 = vset.pattern.permute.xlu0 11
      %249 = vperm.xlu0 %248, %v118
      %v250 = vpop.permute.xlu0 %249
      %v252 = vmul.f32 %v250, %v116
      %254 = vrot.lane.b32.xlu0 %v252, 24
      %v255 = vpop.permute.xlu0 %254
      %vm257 = vcmask 785600
      %258 = vst.msk [vmem:[#allocation2 + $0x30] sm:$0xff] %vm257, %v255
      %259 = vset.pattern.permute.xlu0 12
      %260 = vperm.xlu0 %259, %v118
      %v261 = vpop.permute.xlu0 %260
      %v263 = vmul.f32 %v261, %v116
      %265 = vrot.lane.b32.xlu0 %v263, 96
      %v266 = vpop.permute.xlu0 %265
      %vm268 = vcmask 1048320
      %269 = vst.msk [vmem:[#allocation2 + $0x30] sm:$0xff] %vm268, %v266
      %vm270 = vcmask 326656
      %271 = vst.msk [vmem:[#allocation2 + $0x38] sm:$0xff] %vm270, %v266
      %272 = vset.pattern.permute.xlu0 13
      %273 = vperm.xlu0 %272, %v118
      %v274 = vpop.permute.xlu0 %273
      %v276 = vmul.f32 %v274, %v116
      %278 = vrot.lane.b32.xlu0 %v276, 40
      %v279 = vpop.permute.xlu0 %278
      %vm281 = vcmask 916800
      %282 = vst.msk [vmem:[#allocation2 + $0x38] sm:$0xff] %vm281, %v279
      %283 = vset.pattern.permute.xlu0 14
      %284 = vperm.xlu0 %283, %v118
      %v285 = vpop.permute.xlu0 %284
      %v287 = vmul.f32 %v285, %v116
      %289 = vrot.lane.b32.xlu0 %v287, 112
      %v290 = vpop.permute.xlu0 %289
      %vm292 = vcmask 1048448
      %293 = vst.msk [vmem:[#allocation2 + $0x38] sm:$0xff] %vm292, %v290
      %vm294 = vcmask 457728
      %295 = vst.msk [vmem:[#allocation2 + $0x40] sm:$0xff] %vm294, %v290
      %296 = vset.pattern.permute.xlu0 15
      %297 = vperm.xlu0 %296, %v118
      %v298 = vpop.permute.xlu0 %297
      %v300 = vmul.f32 %v298, %v116
      %302 = vrot.lane.b32.xlu0 %v300, 56
      %v303 = vpop.permute.xlu0 %302
      %vm305 = vcmask 1048000
      %306 = vst.msk [vmem:[#allocation2 + $0x40] sm:$0xff] %vm305, %v303
      %307 = vset.pattern.permute.xlu0 16
      %308 = vperm.xlu0 %307, %v118
      %v309 = vpop.permute.xlu0 %308
      %v311 = vmul.f32 %v309, %v116
      %312 = vst.msk [vmem:[#allocation2 + $0x48] sm:$0xff] %vm125, %v311
      %313 = vst.msk [vmem:[#allocation2 + $0x48] sm:$0xff] %vm136, 0.0
      %314 = vst [vmem:[#allocation11] sm:$0xff] 0.0
    $region41: #{tpu_custom_call.1} parent=1 // pred_fallthru
      _
    %s315 = smul.u32 0, 1280
    %v316 = vld [vmem:[#allocation11] sm:$0xff]
    %s317 = sshra.s32 %s315, 7
    %s318 = sand.u32 %s315, 127
    %s319 = smul.addr %s317, 8
    %s320 = scalar_lea.vmem [#allocation2], %s319
    %v321 = vld [vmem:[%s320] sm:$0xff]
    %v322 = vld [vmem:[%s320 + $0x8] sm:$0xff]
    %v323 = vld [vmem:[%s320 + $0x10] sm:$0xff]
    %v324 = vld [vmem:[%s320 + $0x18] sm:$0xff]
    %v325 = vld [vmem:[%s320 + $0x20] sm:$0xff]
    %v326 = vld [vmem:[%s320 + $0x28] sm:$0xff]
    %v327 = vld [vmem:[%s320 + $0x30] sm:$0xff]
    %v328 = vld [vmem:[%s320 + $0x38] sm:$0xff]
    %v329 = vld [vmem:[%s320 + $0x40] sm:$0xff]
    %v330 = vld [vmem:[%s320 + $0x48] sm:$0xff]
    %v331 = vld [vmem:[#allocation9] sm:$0xff]
    %v332 = vld [vmem:[#allocation9 + $0x8] sm:$0xff]
    %v333 = vld [vmem:[#allocation9 + $0x10] sm:$0xff]
    %v334 = vld [vmem:[#allocation9 + $0x18] sm:$0xff]
    %v335 = vld [vmem:[#allocation9 + $0x20] sm:$0xff]
    %v336 = vld [vmem:[#allocation9 + $0x28] sm:$0xff]
    %v337 = vld [vmem:[#allocation9 + $0x30] sm:$0xff]
    %v338 = vld [vmem:[#allocation9 + $0x38] sm:$0xff]
    %v339 = vld [vmem:[#allocation9 + $0x40] sm:$0xff]
    %v340 = vld [vmem:[#allocation9 + $0x48] sm:$0xff]
    %v341 = vld [vmem:[#allocation9 + $0x50] sm:$0xff]
    %v342 = vld [vmem:[#allocation9 + $0x58] sm:$0xff]
    %v343 = vld [vmem:[#allocation9 + $0x60] sm:$0xff]
    %v344 = vld [vmem:[#allocation9 + $0x68] sm:$0xff]
    %v345 = vld [vmem:[#allocation9 + $0x70] sm:$0xff]
    %v346 = vld [vmem:[#allocation9 + $0x78] sm:$0xff]
    %v347 = vld [vmem:[#allocation9 + $0x80] sm:$0xff]
    %v348 = vld [vmem:[#allocation9 + $0x88] sm:$0xff]
    %v349 = vld [vmem:[#allocation9 + $0x90] sm:$0xff]
    %v350 = vld [vmem:[#allocation9 + $0x98] sm:$0xff]
    %v351 = vld [vmem:[#allocation9 + $0xa0] sm:$0xff]
    %v352 = vld [vmem:[#allocation9 + $0xa8] sm:$0xff]
    %v353 = vld [vmem:[#allocation9 + $0xb0] sm:$0xff]
    %v354 = vld [vmem:[#allocation9 + $0xb8] sm:$0xff]
    %v355 = vld [vmem:[#allocation9 + $0xc0] sm:$0xff]
    %v356 = vld [vmem:[#allocation9 + $0xc8] sm:$0xff]
    %v357 = vld [vmem:[#allocation9 + $0xd0] sm:$0xff]
    %v358 = vld [vmem:[#allocation9 + $0xd8] sm:$0xff]
    %v359 = vld [vmem:[#allocation9 + $0xe0] sm:$0xff]
    %v360 = vld [vmem:[#allocation9 + $0xe8] sm:$0xff]
    %v361 = vld [vmem:[#allocation9 + $0xf0] sm:$0xff]
    %v362 = vld [vmem:[#allocation9 + $0xf8] sm:$0xff]
    %v363 = vld [vmem:[#allocation9 + $0x100] sm:$0xff]
    %v364 = vld [vmem:[#allocation9 + $0x108] sm:$0xff]
    %v365 = vld [vmem:[#allocation9 + $0x110] sm:$0xff]
    %v366 = vld [vmem:[#allocation9 + $0x118] sm:$0xff]
    %v367 = vld [vmem:[#allocation9 + $0x120] sm:$0xff]
    %v368 = vld [vmem:[#allocation9 + $0x128] sm:$0xff]
    %v369 = vld [vmem:[#allocation9 + $0x130] sm:$0xff]
    %v370 = vld [vmem:[#allocation9 + $0x138] sm:$0xff]
    %v371 = vld [vmem:[#allocation9 + $0x140] sm:$0xff]
    %v372 = vld [vmem:[#allocation9 + $0x148] sm:$0xff]
    %v373 = vld [vmem:[#allocation9 + $0x150] sm:$0xff]
    %v374 = vld [vmem:[#allocation9 + $0x158] sm:$0xff]
    %v375 = vld [vmem:[#allocation9 + $0x160] sm:$0xff]
    %v376 = vld [vmem:[#allocation9 + $0x168] sm:$0xff]
    %v377 = vld [vmem:[#allocation9 + $0x170] sm:$0xff]
    %v378 = vld [vmem:[#allocation9 + $0x178] sm:$0xff]
    %v379 = vld [vmem:[#allocation9 + $0x180] sm:$0xff]
    %v380 = vld [vmem:[#allocation9 + $0x188] sm:$0xff]
    %v381 = vld [vmem:[#allocation9 + $0x190] sm:$0xff]
    %v382 = vld [vmem:[#allocation9 + $0x198] sm:$0xff]
    %v383 = vld [vmem:[#allocation9 + $0x1a0] sm:$0xff]
    %v384 = vld [vmem:[#allocation9 + $0x1a8] sm:$0xff]
    %v385 = vld [vmem:[#allocation9 + $0x1b0] sm:$0xff]
    %v386 = vld [vmem:[#allocation9 + $0x1b8] sm:$0xff]
    %v387 = vld [vmem:[#allocation9 + $0x1c0] sm:$0xff]
    %v388 = vld [vmem:[#allocation9 + $0x1c8] sm:$0xff]
    %v389 = vld [vmem:[#allocation9 + $0x1d0] sm:$0xff]
    %v390 = vld [vmem:[#allocation9 + $0x1d8] sm:$0xff]
    %v391 = vld [vmem:[#allocation9 + $0x1e0] sm:$0xff]
    %v392 = vld [vmem:[#allocation9 + $0x1e8] sm:$0xff]
    %v393 = vld [vmem:[#allocation9 + $0x1f0] sm:$0xff]
    %v394 = vld [vmem:[#allocation9 + $0x1f8] sm:$0xff]
    %v395 = vld [vmem:[#allocation9 + $0x200] sm:$0xff]
    %v396 = vld [vmem:[#allocation9 + $0x208] sm:$0xff]
    %v397 = vld [vmem:[#allocation9 + $0x210] sm:$0xff]
    %v398 = vld [vmem:[#allocation9 + $0x218] sm:$0xff]
    %v399 = vld [vmem:[#allocation9 + $0x220] sm:$0xff]
    %v400 = vld [vmem:[#allocation9 + $0x228] sm:$0xff]
    %v401 = vld [vmem:[#allocation9 + $0x230] sm:$0xff]
    %v402 = vld [vmem:[#allocation9 + $0x238] sm:$0xff]
    %v403 = vld [vmem:[#allocation9 + $0x240] sm:$0xff]
    %v404 = vld [vmem:[#allocation9 + $0x248] sm:$0xff]
    %v405 = vld [vmem:[#allocation9 + $0x250] sm:$0xff]
    %v406 = vld [vmem:[#allocation9 + $0x258] sm:$0xff]
    %v407 = vld [vmem:[#allocation9 + $0x260] sm:$0xff]
    %v408 = vld [vmem:[#allocation9 + $0x268] sm:$0xff]
    %v409 = vld [vmem:[#allocation9 + $0x270] sm:$0xff]
    %v410 = vld [vmem:[#allocation9 + $0x278] sm:$0xff]
    %v411 = vld [vmem:[#allocation9 + $0x280] sm:$0xff]
    %v412 = vld [vmem:[#allocation9 + $0x288] sm:$0xff]
    %v413 = vld [vmem:[#allocation9 + $0x290] sm:$0xff]
    %v414 = vld [vmem:[#allocation9 + $0x298] sm:$0xff]
    %v415 = vld [vmem:[#allocation9 + $0x2a0] sm:$0xff]
    %v416 = vld [vmem:[#allocation9 + $0x2a8] sm:$0xff]
    %v417 = vld [vmem:[#allocation9 + $0x2b0] sm:$0xff]
    %v418 = vld [vmem:[#allocation9 + $0x2b8] sm:$0xff]
    %v419 = vld [vmem:[#allocation9 + $0x2c0] sm:$0xff]
    %v420 = vld [vmem:[#allocation9 + $0x2c8] sm:$0xff]
    %v421 = vld [vmem:[#allocation9 + $0x2d0] sm:$0xff]
    %v422 = vld [vmem:[#allocation9 + $0x2d8] sm:$0xff]
    %v423 = vld [vmem:[#allocation9 + $0x2e0] sm:$0xff]
    %v424 = vld [vmem:[#allocation9 + $0x2e8] sm:$0xff]
    %v425 = vld [vmem:[#allocation9 + $0x2f0] sm:$0xff]
    %v426 = vld [vmem:[#allocation9 + $0x2f8] sm:$0xff]
    %v427 = vld [vmem:[#allocation9 + $0x300] sm:$0xff]
    %v428 = vld [vmem:[#allocation9 + $0x308] sm:$0xff]
    %v429 = vld [vmem:[#allocation9 + $0x310] sm:$0xff]
    %v430 = vld [vmem:[#allocation9 + $0x318] sm:$0xff]
    %v431 = vld [vmem:[#allocation9 + $0x320] sm:$0xff]
    %v432 = vld [vmem:[#allocation9 + $0x328] sm:$0xff]
    %v433 = vld [vmem:[#allocation9 + $0x330] sm:$0xff]
    %v434 = vld [vmem:[#allocation9 + $0x338] sm:$0xff]
    %v435 = vld [vmem:[#allocation9 + $0x340] sm:$0xff]
    %v436 = vld [vmem:[#allocation9 + $0x348] sm:$0xff]
    %v437 = vld [vmem:[#allocation9 + $0x350] sm:$0xff]
    %v438 = vld [vmem:[#allocation9 + $0x358] sm:$0xff]
    %v439 = vld [vmem:[#allocation9 + $0x360] sm:$0xff]
    %v440 = vld [vmem:[#allocation9 + $0x368] sm:$0xff]
    %v441 = vld [vmem:[#allocation9 + $0x370] sm:$0xff]
    %v442 = vld [vmem:[#allocation9 + $0x378] sm:$0xff]
    %v443 = vld [vmem:[#allocation9 + $0x380] sm:$0xff]
    %v444 = vld [vmem:[#allocation9 + $0x388] sm:$0xff]
    %v445 = vld [vmem:[#allocation9 + $0x390] sm:$0xff]
    %v446 = vld [vmem:[#allocation9 + $0x398] sm:$0xff]
    %v447 = vld [vmem:[#allocation9 + $0x3a0] sm:$0xff]
    %v448 = vld [vmem:[#allocation9 + $0x3a8] sm:$0xff]
    %v449 = vld [vmem:[#allocation9 + $0x3b0] sm:$0xff]
    %v450 = vld [vmem:[#allocation9 + $0x3b8] sm:$0xff]
    %v451 = vld [vmem:[#allocation9 + $0x3c0] sm:$0xff]
    %v452 = vld [vmem:[#allocation9 + $0x3c8] sm:$0xff]
    %v453 = vld [vmem:[#allocation9 + $0x3d0] sm:$0xff]
    %v454 = vld [vmem:[#allocation9 + $0x3d8] sm:$0xff]
    %v455 = vld [vmem:[#allocation9 + $0x3e0] sm:$0xff]
    %v456 = vld [vmem:[#allocation9 + $0x3e8] sm:$0xff]
    %v457 = vld [vmem:[#allocation9 + $0x3f0] sm:$0xff]
    %v458 = vld [vmem:[#allocation9 + $0x3f8] sm:$0xff]
    %v459 = vld [vmem:[#allocation9 + $0x400] sm:$0xff]
    %v460 = vld [vmem:[#allocation9 + $0x408] sm:$0xff]
    %v461 = vld [vmem:[#allocation9 + $0x410] sm:$0xff]
    %v462 = vld [vmem:[#allocation9 + $0x418] sm:$0xff]
    %v463 = vld [vmem:[#allocation9 + $0x420] sm:$0xff]
    %v464 = vld [vmem:[#allocation9 + $0x428] sm:$0xff]
    %v465 = vld [vmem:[#allocation9 + $0x430] sm:$0xff]
    %v466 = vld [vmem:[#allocation9 + $0x438] sm:$0xff]
    %v467 = vld [vmem:[#allocation9 + $0x440] sm:$0xff]
    %v468 = vld [vmem:[#allocation9 + $0x448] sm:$0xff]
    %v469 = vld [vmem:[#allocation9 + $0x450] sm:$0xff]
    %v470 = vld [vmem:[#allocation9 + $0x458] sm:$0xff]
    %v471 = vld [vmem:[#allocation9 + $0x460] sm:$0xff]
    %v472 = vld [vmem:[#allocation9 + $0x468] sm:$0xff]
    %v473 = vld [vmem:[#allocation9 + $0x470] sm:$0xff]
    %v474 = vld [vmem:[#allocation9 + $0x478] sm:$0xff]
    %v475 = vld [vmem:[#allocation9 + $0x480] sm:$0xff]
    %v476 = vld [vmem:[#allocation9 + $0x488] sm:$0xff]
    %v477 = vld [vmem:[#allocation9 + $0x490] sm:$0xff]
    %v478 = vld [vmem:[#allocation9 + $0x498] sm:$0xff]
    %v479 = vld [vmem:[#allocation9 + $0x4a0] sm:$0xff]
    %v480 = vld [vmem:[#allocation9 + $0x4a8] sm:$0xff]
    %v481 = vld [vmem:[#allocation9 + $0x4b0] sm:$0xff]
    %v482 = vld [vmem:[#allocation9 + $0x4b8] sm:$0xff]
    %v483 = vld [vmem:[#allocation9 + $0x4c0] sm:$0xff]
    %v484 = vld [vmem:[#allocation9 + $0x4c8] sm:$0xff]
    %v485 = vld [vmem:[#allocation9 + $0x4d0] sm:$0xff]
    %v486 = vld [vmem:[#allocation9 + $0x4d8] sm:$0xff]
    %v487 = vld [vmem:[#allocation9 + $0x4e0] sm:$0xff]
    %v488 = vld [vmem:[#allocation9 + $0x4e8] sm:$0xff]
    %v489 = vld [vmem:[#allocation9 + $0x4f0] sm:$0xff]
    %v490 = vld [vmem:[#allocation9 + $0x4f8] sm:$0xff]
    %491 = vmatpush.msra.mxu0 %v346
    %492 = vmatpush.msra.mxu0 %v345
    %493 = vmatpush.msra.mxu0 %v344
    %494 = vmatpush.msra.mxu0 %v343
    %495 = vmatpush.msra.mxu0 %v342
    %496 = vmatpush.msra.mxu0 %v341
    %497 = vmatpush.msra.mxu0 %v340
    %498 = vmatpush.msra.mxu0 %v339
    %499 = vmatpush.msra.mxu0 %v338
    %500 = vmatpush.msra.mxu0 %v337
    %501 = vmatpush.msra.mxu0 %v336
    %502 = vmatpush.msra.mxu0 %v335
    %503 = vmatpush.msra.mxu0 %v334
    %504 = vmatpush.msra.mxu0 %v333
    %505 = vmatpush.msra.mxu0 %v332
    %506 = vmatpush.msra.mxu0 %v331
    %507 = vmatmul.f32.gmra.mxu0 %v321
    %v508 = vpop.f32.mrf.mxu0
    %v509 = vadd.f32 0.0, %v508
    %510 = vdwg.mxu0
    %511 = vmatpush.msra.mxu0 %v362
    %512 = vmatpush.msra.mxu0 %v361
    %513 = vmatpush.msra.mxu0 %v360
    %514 = vmatpush.msra.mxu0 %v359
    %515 = vmatpush.msra.mxu0 %v358
    %516 = vmatpush.msra.mxu0 %v357
    %517 = vmatpush.msra.mxu0 %v356
    %518 = vmatpush.msra.mxu0 %v355
    %519 = vmatpush.msra.mxu0 %v354
    %520 = vmatpush.msra.mxu0 %v353
    %521 = vmatpush.msra.mxu0 %v352
    %522 = vmatpush.msra.mxu0 %v351
    %523 = vmatpush.msra.mxu0 %v350
    %524 = vmatpush.msra.mxu0 %v349
    %525 = vmatpush.msra.mxu0 %v348
    %526 = vmatpush.msra.mxu0 %v347
    %527 = vmatmul.f32.gmra.mxu0 %v322
    %v528 = vpop.f32.mrf.mxu0
    %v529 = vadd.f32 %v509, %v528
    %530 = vdwg.mxu0
    %531 = vmatpush.msra.mxu0 %v378
    %532 = vmatpush.msra.mxu0 %v377
    %533 = vmatpush.msra.mxu0 %v376
    %534 = vmatpush.msra.mxu0 %v375
    %535 = vmatpush.msra.mxu0 %v374
    %536 = vmatpush.msra.mxu0 %v373
    %537 = vmatpush.msra.mxu0 %v372
    %538 = vmatpush.msra.mxu0 %v371
    %539 = vmatpush.msra.mxu0 %v370
    %540 = vmatpush.msra.mxu0 %v369
    %541 = vmatpush.msra.mxu0 %v368
    %542 = vmatpush.msra.mxu0 %v367
    %543 = vmatpush.msra.mxu0 %v366
    %544 = vmatpush.msra.mxu0 %v365
    %545 = vmatpush.msra.mxu0 %v364
    %546 = vmatpush.msra.mxu0 %v363
    %547 = vmatmul.f32.gmra.mxu0 %v323
    %v548 = vpop.f32.mrf.mxu0
    %v549 = vadd.f32 %v529, %v548
    %550 = vdwg.mxu0
    %551 = vmatpush.msra.mxu0 %v394
    %552 = vmatpush.msra.mxu0 %v393
    %553 = vmatpush.msra.mxu0 %v392
    %554 = vmatpush.msra.mxu0 %v391
    %555 = vmatpush.msra.mxu0 %v390
    %556 = vmatpush.msra.mxu0 %v389
    %557 = vmatpush.msra.mxu0 %v388
    %558 = vmatpush.msra.mxu0 %v387
    %559 = vmatpush.msra.mxu0 %v386
    %560 = vmatpush.msra.mxu0 %v385
    %561 = vmatpush.msra.mxu0 %v384
    %562 = vmatpush.msra.mxu0 %v383
    %563 = vmatpush.msra.mxu0 %v382
    %564 = vmatpush.msra.mxu0 %v381
    %565 = vmatpush.msra.mxu0 %v380
    %566 = vmatpush.msra.mxu0 %v379
    %567 = vmatmul.f32.gmra.mxu0 %v324
    %v568 = vpop.f32.mrf.mxu0
    %v569 = vadd.f32 %v549, %v568
    %570 = vdwg.mxu0
    %571 = vmatpush.msra.mxu0 %v410
    %572 = vmatpush.msra.mxu0 %v409
    %573 = vmatpush.msra.mxu0 %v408
    %574 = vmatpush.msra.mxu0 %v407
    %575 = vmatpush.msra.mxu0 %v406
    %576 = vmatpush.msra.mxu0 %v405
    %577 = vmatpush.msra.mxu0 %v404
    %578 = vmatpush.msra.mxu0 %v403
    %579 = vmatpush.msra.mxu0 %v402
    %580 = vmatpush.msra.mxu0 %v401
    %581 = vmatpush.msra.mxu0 %v400
    %582 = vmatpush.msra.mxu0 %v399
    %583 = vmatpush.msra.mxu0 %v398
    %584 = vmatpush.msra.mxu0 %v397
    %585 = vmatpush.msra.mxu0 %v396
    %586 = vmatpush.msra.mxu0 %v395
    %587 = vmatmul.f32.gmra.mxu0 %v325
    %v588 = vpop.f32.mrf.mxu0
    %v589 = vadd.f32 %v569, %v588
    %590 = vdwg.mxu0
    %591 = vmatpush.msra.mxu0 %v426
    %592 = vmatpush.msra.mxu0 %v425
    %593 = vmatpush.msra.mxu0 %v424
    %594 = vmatpush.msra.mxu0 %v423
    %595 = vmatpush.msra.mxu0 %v422
    %596 = vmatpush.msra.mxu0 %v421
    %597 = vmatpush.msra.mxu0 %v420
    %598 = vmatpush.msra.mxu0 %v419
    %599 = vmatpush.msra.mxu0 %v418
    %600 = vmatpush.msra.mxu0 %v417
    %601 = vmatpush.msra.mxu0 %v416
    %602 = vmatpush.msra.mxu0 %v415
    %603 = vmatpush.msra.mxu0 %v414
    %604 = vmatpush.msra.mxu0 %v413
    %605 = vmatpush.msra.mxu0 %v412
    %606 = vmatpush.msra.mxu0 %v411
    %607 = vmatmul.f32.gmra.mxu0 %v326
    %v608 = vpop.f32.mrf.mxu0
    %v609 = vadd.f32 %v589, %v608
    %610 = vdwg.mxu0
    %611 = vmatpush.msra.mxu0 %v442
    %612 = vmatpush.msra.mxu0 %v441
    %613 = vmatpush.msra.mxu0 %v440
    %614 = vmatpush.msra.mxu0 %v439
    %615 = vmatpush.msra.mxu0 %v438
    %616 = vmatpush.msra.mxu0 %v437
    %617 = vmatpush.msra.mxu0 %v436
    %618 = vmatpush.msra.mxu0 %v435
    %619 = vmatpush.msra.mxu0 %v434
    %620 = vmatpush.msra.mxu0 %v433
    %621 = vmatpush.msra.mxu0 %v432
    %622 = vmatpush.msra.mxu0 %v431
    %623 = vmatpush.msra.mxu0 %v430
    %624 = vmatpush.msra.mxu0 %v429
    %625 = vmatpush.msra.mxu0 %v428
    %626 = vmatpush.msra.mxu0 %v427
    %627 = vmatmul.f32.gmra.mxu0 %v327
    %v628 = vpop.f32.mrf.mxu0
    %v629 = vadd.f32 %v609, %v628
    %630 = vdwg.mxu0
    %631 = vmatpush.msra.mxu0 %v458
    %632 = vmatpush.msra.mxu0 %v457
    %633 = vmatpush.msra.mxu0 %v456
    %634 = vmatpush.msra.mxu0 %v455
    %635 = vmatpush.msra.mxu0 %v454
    %636 = vmatpush.msra.mxu0 %v453
    %637 = vmatpush.msra.mxu0 %v452
    %638 = vmatpush.msra.mxu0 %v451
    %639 = vmatpush.msra.mxu0 %v450
    %640 = vmatpush.msra.mxu0 %v449
    %641 = vmatpush.msra.mxu0 %v448
    %642 = vmatpush.msra.mxu0 %v447
    %643 = vmatpush.msra.mxu0 %v446
    %644 = vmatpush.msra.mxu0 %v445
    %645 = vmatpush.msra.mxu0 %v444
    %646 = vmatpush.msra.mxu0 %v443
    %647 = vmatmul.f32.gmra.mxu0 %v328
    %v648 = vpop.f32.mrf.mxu0
    %v649 = vadd.f32 %v629, %v648
    %650 = vdwg.mxu0
    %651 = vmatpush.msra.mxu0 %v474
    %652 = vmatpush.msra.mxu0 %v473
    %653 = vmatpush.msra.mxu0 %v472
    %654 = vmatpush.msra.mxu0 %v471
    %655 = vmatpush.msra.mxu0 %v470
    %656 = vmatpush.msra.mxu0 %v469
    %657 = vmatpush.msra.mxu0 %v468
    %658 = vmatpush.msra.mxu0 %v467
    %659 = vmatpush.msra.mxu0 %v466
    %660 = vmatpush.msra.mxu0 %v465
    %661 = vmatpush.msra.mxu0 %v464
    %662 = vmatpush.msra.mxu0 %v463
    %663 = vmatpush.msra.mxu0 %v462
    %664 = vmatpush.msra.mxu0 %v461
    %665 = vmatpush.msra.mxu0 %v460
    %666 = vmatpush.msra.mxu0 %v459
    %667 = vmatmul.f32.gmra.mxu0 %v329
    %v668 = vpop.f32.mrf.mxu0
    %v669 = vadd.f32 %v649, %v668
    %670 = vdwg.mxu0
    %671 = vmatpush.msra.mxu0 %v490
    %672 = vmatpush.msra.mxu0 %v489
    %673 = vmatpush.msra.mxu0 %v488
    %674 = vmatpush.msra.mxu0 %v487
    %675 = vmatpush.msra.mxu0 %v486
    %676 = vmatpush.msra.mxu0 %v485
    %677 = vmatpush.msra.mxu0 %v484
    %678 = vmatpush.msra.mxu0 %v483
    %679 = vmatpush.msra.mxu0 %v482
    %680 = vmatpush.msra.mxu0 %v481
    %681 = vmatpush.msra.mxu0 %v480
    %682 = vmatpush.msra.mxu0 %v479
    %683 = vmatpush.msra.mxu0 %v478
    %684 = vmatpush.msra.mxu0 %v477
    %685 = vmatpush.msra.mxu0 %v476
    %686 = vmatpush.msra.mxu0 %v475
    %687 = vmatmul.f32.gmra.mxu0 %v330
    %v688 = vpop.f32.mrf.mxu0
    %v689 = vadd.f32 %v669, %v688
    %690 = vdwg.mxu0
    %v691 = vadd.f32 %v316, %v689
    %692 = vst [vmem:[#allocation11] sm:$0xff] %v691
    // Predicated region
    $region42: #{tpu_custom_call.1} parent=1 // pred_check
      _
    $region43: #{tpu_custom_call.1} parent=1 // pred_check_branch
      %694 = sbr.rel (0) target = $region45
    $region44: #{tpu_custom_call.1} parent=1 // pred_region
      %696 = vsyncadd [#allocation5], 0
      %s698 = sshll.u32 [#allocation11], 4
      %s699 = int_to_ptr.vmem [resolvable:$true] %s698
      %s700 = sshll.u32 %s5, 4
      %s701 = int_to_ptr.hbm [resolvable:$true] %s700
      %703 = dma.vmem_to_hbm [thread:$0]  %s699, 128, %s701, [#allocation5]
    $region45: #{tpu_custom_call.1} parent=1 // pred_fallthru
      _
    // Predicated region
    $region46: #{tpu_custom_call.1} parent=1 // pred_check
      _
    $region47: #{tpu_custom_call.1} parent=1 // pred_check_branch
      %705 = sbr.rel (0) target = $region49
    $region48: #{tpu_custom_call.1} parent=1 // pred_region
      %707 = dma.done [#allocation5], 128
    $region49: #{tpu_custom_call.1} parent=1 // pred_fallthru
      _
    %708 = vsyncpa [#allocation4], 1
    %709 = vsyncpa [#allocation7], 1
    %710 = vsyncpa [#allocation10], 1
    %711 = vsyncpa [#allocation5], 1

</llo_original>
